<compile_context>
chip_gen: v7x
topology: tpu7x:2x2x1
jax: 0.10.0
libtpu: 0.0.40
codegen_flags: <defaults>
</compile_context>

<pallas_src>
import functools

import numpy as np
import jax
import jax.numpy as jnp
from jax.experimental import pallas as pl
from jax.experimental.pallas import tpu as pltpu


# ----------------------------- Pallas kernel ------------------------------- #
def _pos_emb_kernel(x_ref, prev_ref, next_ref, w_ref, p_ref, o_ref, xcat_ref, *,
                    kernel_size, pad_l, pad_r, halo, c_real, eps):
    """One (batch, time-tile) grid step.

    x_ref    : (1, tT, Cp)  current time tile (also the residual)
    prev_ref : (1, H, Cp)   H rows immediately preceding the tile (masked at t=0)
    next_ref : (1, H, Cp)   H rows immediately following the tile (masked at t=NT-1)
    w_ref    : (K*Cp, Cp)   stacked dense block-diagonal grouped conv weight (x.dtype)
    p_ref    : (8, Cp)      row 0 = conv bias, row 1 = LN gamma, row 2 = LN beta (f32)
    o_ref    : (1, tT, Cp)  output
    xcat_ref : (tT, K*Cp)   VMEM scratch holding the K shifted conv taps (x.dtype)
    """
    tT = x_ref.shape[1]
    Cp = x_ref.shape[2]
    K, H = kernel_size, halo

    ti = pl.program_id(1)
    nt = pl.num_programs(1)

    x = x_ref[0]                                      # (tT, Cp), x.dtype -> MXU

    # Halo rows consumed by the conv; out-of-sequence halos (first / last tile)
    # are the conv zero-padding.
    if pad_l > 0:
        prev_tail = prev_ref[0][H - pad_l:, :]        # (pad_l, Cp)
        prev_tail = jnp.where(ti > 0, prev_tail, jnp.zeros_like(prev_tail))
    if pad_r > 0:
        next_head = next_ref[0][:pad_r, :]            # (pad_r, Cp)
        next_head = jnp.where(ti < nt - 1, next_head, jnp.zeros_like(next_head))

    # Scatter the K shifted taps straight into the (tT, K*Cp) scratch.  Stores
    # are lane-aligned (offsets k*Cp, Cp % 128 == 0); the halo splice is a small
    # sublane-axis stitch.  No lane-axis concat, no (tT, K*Cp) value temporary.
    for k in range(K):
        s = k - pad_l
        if s == 0:
            tap = x
        elif s < 0:
            tap = jnp.concatenate([prev_tail[pad_l + s:, :], x[:tT + s, :]], axis=0)
        else:
            tap = jnp.concatenate([x[s:, :], next_head[:s, :]], axis=0)
        xcat_ref[:, k * Cp:(k + 1) * Cp] = tap

    # Fused conv: one MXU matmul accumulating over all K taps, in x.dtype.
    acc = jnp.dot(xcat_ref[...], w_ref[...], preferred_element_type=jnp.float32)
    acc = acc + p_ref[0, :][None, :]                  # conv bias (f32)

    # exact (erf-based) GELU -- matches torch.nn.functional.gelu default
    y = 0.5 * acc * (1.0 + jax.lax.erf(acc * np.float32(1.0 / np.sqrt(2.0))))

    # residual add (the same tile already resident in VMEM -- no extra HBM read)
    y = y + x.astype(jnp.float32)

    # LayerNorm over the real channels, one pass (sum & sum-of-squares); padded
    # channels carry exact zeros end-to-end so they never perturb the sums.
    inv_c = np.float32(1.0 / c_real)
    mean = jnp.sum(y, axis=-1, keepdims=True) * inv_c
    var = jnp.sum(y * y, axis=-1, keepdims=True) * inv_c - mean * mean
    yn = (y - mean) * jax.lax.rsqrt(var + np.float32(eps))
    yn = yn * p_ref[1, :][None, :] + p_ref[2, :][None, :]

    # dropout: identity at inference
    o_ref[0] = yn.astype(o_ref.dtype)


# ------------------------------ wrapper ------------------------------------ #
def positional_embedding(x, w_dense, bias, gamma, beta, *, kernel_size,
                         eps=1e-5, t_tile=None, vmem_limit_bytes=None):
    """x: (B, T, C); w_dense: (K, C_in, C_out) dense block-diagonal grouped weight."""
    B, T, C = x.shape
    K = kernel_size
    # Conv1d pad = K//2 both sides; for even K the last output is dropped
    # (num_remove=1), equivalent to asymmetric padding (K//2, K-1-K//2).
    pad_l = K // 2
    pad_r = K - 1 - pad_l

    assert T % 8 == 0, "sequence length must be a multiple of 8"

    # Halo width: multiple of 8 sublanes, large enough to cover the conv padding.
    H = 8 * ((max(pad_l, pad_r, 1) + 7) // 8)
    assert T >= H, "sequence too short for the conv halo"

    # Lane-dense channels: pad C up to a multiple of 128 so all loads/stores and
    # the LayerNorm epilogue run at full lane utilization.  Padded channels carry
    # exact zeros end-to-end and are sliced off afterwards.  (Trade-off: the pad
    # materializes a padded copy of x; lane density is the bigger lever.)
    Cp = ((C + 127) // 128) * 128
    x_in = x if Cp == C else jnp.pad(x, ((0, 0), (0, 0), (0, Cp - C)))

    # Stacked (K*Cp, Cp) conv weight in x.dtype so the MXU runs its native path.
    # TODO(synk): for C//groups >= 128, exploit the block-diagonal structure with
    # per-group (tT, K*Cg) @ (K*Cg, Cg) dots instead of the densified weight.
    w = w_dense if Cp == C else jnp.pad(w_dense, ((0, 0), (0, Cp - C), (0, Cp - C)))
    w_stack = w.reshape(K * Cp, Cp).astype(x.dtype)

    # bias / LN gamma / LN beta merged into a single small resident f32 operand.
    params = jnp.zeros((8, Cp), jnp.float32)
    params = params.at[0, :C].set(bias.astype(jnp.float32))
    params = params.at[1, :C].set(gamma.astype(jnp.float32))
    params = params.at[2, :C].set(beta.astype(jnp.float32))

    # --- VMEM budget & time-tile selection ----------------------------------
    if vmem_limit_bytes is None:
        try:  # ~48 MiB on v7x (64 MiB physical), ~96 MiB on v5e/v6e (128 MiB)
            cap = getattr(pltpu.get_tpu_info(), "vmem_capacity_bytes",
                          64 * 1024 * 1024)
        except Exception:
            cap = 64 * 1024 * 1024
        vmem_limit_bytes = max(32 * 1024 * 1024,
                               min(int(cap) * 3 // 4, 96 * 1024 * 1024))

    dt = x_in.dtype.itemsize
    resident = K * Cp * Cp * dt + 8 * Cp * 4 + 4 * H * Cp * dt
    # per time-row: double-buffered in+out tiles, xcat scratch, ~4 f32 temporaries
    per_row = (2 + 2) * Cp * dt + K * Cp * dt + 4 * Cp * 4
    budget = int(vmem_limit_bytes * 0.55) - resident
    t_cap = max(H, budget // per_row) if budget > per_row else H
    if t_tile is not None:
        t_cap = max(H, t_tile)
    if B == 1:
        # keep >= 2 grid steps so both TensorCores of a dual-TC chip get work
        t_cap = min(t_cap, max(H, T // 2))

    tT, cand = None, H
    limit = min(T, t_cap)
    while cand <= limit:
        if T % cand == 0:
            tT = cand
        cand += H
    if tT is None:
        # No multiple of the halo width divides T: fall back to one resident
        # tile (halo blocks are then fully masked and their index is unused).
        tT = T
    NT = T // tT
    r = max(tT // H, 1)          # halo blocks per tile
    n_hb = T // H                # number of full halo blocks in the sequence

    kernel = functools.partial(_pos_emb_kernel, kernel_size=K, pad_l=pad_l,
                               pad_r=pad_r, halo=H, c_real=C, eps=eps)

    out = pl.pallas_call(
        kernel,
        out_shape=jax.ShapeDtypeStruct((B, T, Cp), x.dtype),
        grid_spec=pltpu.PrefetchScalarGridSpec(
            num_scalar_prefetch=0,
            grid=(B, NT),
            in_specs=[
                pl.BlockSpec((1, tT, Cp), lambda b, t: (b, t, 0)),        # tile (+residual)
                pl.BlockSpec((1, H, Cp),
                             lambda b, t: (b, jnp.maximum(t * r - 1, 0), 0)),          # left halo
                pl.BlockSpec((1, H, Cp),
                             lambda b, t: (b, jnp.minimum((t + 1) * r, n_hb - 1), 0)),  # right halo
                pl.BlockSpec((K * Cp, Cp), lambda b, t: (0, 0)),          # stacked conv weight
                pl.BlockSpec((8, Cp), lambda b, t: (0, 0)),               # bias/gamma/beta
            ],
            out_specs=pl.BlockSpec((1, tT, Cp), lambda b, t: (b, t, 0)),
            scratch_shapes=[pltpu.VMEM((tT, K * Cp), x_in.dtype)],        # tap assembly
        ),
        compiler_params=pltpu.CompilerParams(
            dimension_semantics=("parallel", "parallel"),
            vmem_limit_bytes=int(vmem_limit_bytes)),
    )(x_in, x_in, x_in, w_stack, params)

    return out if Cp == C else out[..., :C]


# ------------------------- parameter construction -------------------------- #
def make_params(key, hidden_channels, kernel_size, groups):
    """Deterministic synthetic parameters mirroring the module's __init__ shapes."""
    C, K, G = hidden_channels, kernel_size, groups
    Cg = C // G
    k_v, k_g, k_b = jax.random.split(key, 3)

    # Conv1d weight_v: (out_channels, in_channels/groups, kernel_size)
    v = jax.random.normal(k_v, (C, Cg, K), dtype=jnp.float32) * 0.1
    # weight_norm(dim=2): g has shape (1, 1, K), norm over dims (0, 1)
    g_wn = jax.random.normal(k_g, (1, 1, K), dtype=jnp.float32) * 0.1 + 1.0
    bias = jax.random.normal(k_b, (C,), dtype=jnp.float32) * 0.1

    # compose weight_norm: w = g * v / ||v||_{dims 0,1}
    norm = jnp.sqrt(jnp.sum(v * v, axis=(0, 1), keepdims=True))
    w = g_wn * v / norm                                   # (C_out, Cg, K)

    # expand grouped weight into dense block-diagonal (K, C_in, C_out) matrices
    w_np = np.asarray(w)
    W = np.zeros((K, C, C), dtype=np.float32)
    for co in range(C):
        grp = co // Cg
        W[:, grp * Cg:(grp + 1) * Cg, co] = w_np[co].T    # (K, Cg)
    w_dense = jnp.asarray(W)

    gamma = jnp.ones((C,), dtype=jnp.float32)             # LayerNorm affine init
    beta = jnp.zeros((C,), dtype=jnp.float32)
    return w_dense, bias, gamma, beta


# ----------------------------- pure-JAX reference --------------------------- #
def reference(x, w_dense, bias, gamma, beta, kernel_size, eps=1e-5):
    B, T, C = x.shape
    K = kernel_size
    pad_l, pad_r = K // 2, K - 1 - K // 2
    xpad = jnp.pad(x, ((0, 0), (pad_l, pad_r), (0, 0)))
    y = jnp.zeros((B, T, C), jnp.float32)
    for k in range(K):
        y = y + jnp.einsum('btc,cd->btd', xpad[:, k:k + T, :], w_dense[k])
    y = y + bias[None, None, :]
    y = 0.5 * y * (1.0 + jax.lax.erf(y / np.sqrt(2.0)))
    y = y + x
    mean = y.mean(-1, keepdims=True)
    var = ((y - mean) ** 2).mean(-1, keepdims=True)
    return (y - mean) * jax.lax.rsqrt(var + eps) * gamma + beta


# --------------------------------- main ------------------------------------ #
if __name__ == "__main__":
    key = jax.random.PRNGKey(0)

    # --- Config A: small C=32 (channel-padding path), odd K, tiled time ------
    B, T, C, K, G = 2, 32, 32, 3, 4
    k_x, k_p, key = jax.random.split(key, 3)
    x = jax.random.normal(k_x, (B, T, C), dtype=jnp.float32)
    w_dense, bias, gamma, beta = make_params(k_p, C, K, G)
    ref = jax.block_until_ready(reference(x, w_dense, bias, gamma, beta, K))

    out = jax.block_until_ready(                                  # multi-tile (halos + masks)
        positional_embedding(x, w_dense, bias, gamma, beta, kernel_size=K, t_tile=8))
    np.testing.assert_allclose(np.asarray(out), np.asarray(ref), rtol=1e-4, atol=1e-4)

    out = jax.block_until_ready(                                  # auto-tiled (single tile)
        positional_embedding(x, w_dense, bias, gamma, beta, kernel_size=K))
    np.testing.assert_allclose(np.asarray(out), np.asarray(ref), rtol=1e-4, atol=1e-4)

    # --- Config B: lane-dense C=128, even K (num_remove path), multi-tile ----
    B, T, C, K, G = 2, 64, 128, 4, 2
    k_x, k_p, key = jax.random.split(key, 3)
    x = jax.random.normal(k_x, (B, T, C), dtype=jnp.float32)
    w_dense, bias, gamma, beta = make_params(k_p, C, K, G)
    ref = jax.block_until_ready(reference(x, w_dense, bias, gamma, beta, K))

    out = jax.block_until_ready(
        positional_embedding(x, w_dense, bias, gamma, beta, kernel_size=K, t_tile=16))
    np.testing.assert_allclose(np.asarray(out), np.asarray(ref), rtol=1e-4, atol=1e-4)

    out = jax.block_until_ready(
        positional_embedding(x, w_dense, bias, gamma, beta, kernel_size=K))
    np.testing.assert_allclose(np.asarray(out), np.asarray(ref), rtol=1e-4, atol=1e-4)

    # bf16 I/O: weights are cast to x.dtype in the wrapper -> native bf16 MXU path
    out_bf16 = jax.block_until_ready(
        positional_embedding(x.astype(jnp.bfloat16), w_dense, bias, gamma, beta,
                             kernel_size=K, t_tile=16))
    assert out_bf16.dtype == jnp.bfloat16
    np.testing.assert_allclose(np.asarray(out_bf16.astype(jnp.float32)),
                               np.asarray(ref), rtol=1e-1, atol=1e-1)

    print("KERNEL_OK")
</pallas_src>

<mosaic_0001>
module attributes {stable_mosaic.version = 11 : i64} {
  func.func @_pos_emb_kernel(%arg0: i32, %arg1: i32, %arg2: memref<1x8x128xf32, #tpu.memory_space<vmem>>, %arg3: memref<1x8x128xf32, #tpu.memory_space<vmem>>, %arg4: memref<1x8x128xf32, #tpu.memory_space<vmem>>, %arg5: memref<384x128xf32, #tpu.memory_space<vmem>>, %arg6: memref<8x128xf32, #tpu.memory_space<vmem>>, %arg7: memref<1x8x128xf32, #tpu.memory_space<vmem>>, %arg8: memref<8x384xf32, #tpu.memory_space<vmem>>) attributes {dimension_semantics = [#tpu.dimension_semantics<parallel>, #tpu.dimension_semantics<parallel>], iteration_bounds = array<i64: 2, 4>, scalar_prefetch = 0 : i64, scratch_operands = 1 : i64, tpu.core_type = #tpu.core_type<tc>, window_params = [{transform_indices = @transform_0, window_bounds = array<i64: 1, 8, 128>}, {transform_indices = @transform_1, window_bounds = array<i64: 1, 8, 128>}, {transform_indices = @transform_2, window_bounds = array<i64: 1, 8, 128>}, {pipeline_mode = #tpu.pipeline_mode<synchronous>, transform_indices = @transform_3, window_bounds = array<i64: 384, 128>}, {pipeline_mode = #tpu.pipeline_mode<synchronous>, transform_indices = @transform_4, window_bounds = array<i64: 8, 128>}, {transform_indices = @transform_5, window_bounds = array<i64: 1, 8, 128>}]} {
    %c0 = arith.constant 0 : index
    %c0_0 = arith.constant 0 : index
    %c0_1 = arith.constant 0 : index
    %0 = vector.load %arg2[%c0, %c0_0, %c0_1] : memref<1x8x128xf32, #tpu.memory_space<vmem>>, vector<1x8x128xf32>
    %1 = vector.shape_cast %0 : vector<1x8x128xf32> to vector<8x128xf32>
    %c0_2 = arith.constant 0 : index
    %c0_3 = arith.constant 0 : index
    %c0_4 = arith.constant 0 : index
    %2 = vector.load %arg3[%c0_2, %c0_3, %c0_4] : memref<1x8x128xf32, #tpu.memory_space<vmem>>, vector<1x8x128xf32>
    %3 = vector.shape_cast %2 : vector<1x8x128xf32> to vector<8x128xf32>
    %4 = vector.extract_strided_slice %3 {offsets = [7, 0], sizes = [1, 128], strides = [1, 1]} : vector<8x128xf32> to vector<1x128xf32>
    %c0_i32 = arith.constant 0 : i32
    %5 = arith.cmpi sgt, %arg1, %c0_i32 : i32
    %cst = arith.constant 0.000000e+00 : f32
    %6 = vector.broadcast %cst : f32 to vector<1x128xf32>
    %7 = arith.select %5, %4, %6 : vector<1x128xf32>
    %c0_5 = arith.constant 0 : index
    %c0_6 = arith.constant 0 : index
    %c0_7 = arith.constant 0 : index
    %8 = vector.load %arg4[%c0_5, %c0_6, %c0_7] : memref<1x8x128xf32, #tpu.memory_space<vmem>>, vector<1x8x128xf32>
    %9 = vector.shape_cast %8 : vector<1x8x128xf32> to vector<8x128xf32>
    %10 = vector.extract_strided_slice %9 {offsets = [0, 0], sizes = [1, 128], strides = [1, 1]} : vector<8x128xf32> to vector<1x128xf32>
    %c3_i32 = arith.constant 3 : i32
    %11 = arith.cmpi slt, %arg1, %c3_i32 : i32
    %cst_8 = arith.constant 0.000000e+00 : f32
    %12 = vector.broadcast %cst_8 : f32 to vector<1x128xf32>
    %13 = arith.select %11, %10, %12 : vector<1x128xf32>
    %14 = vector.extract_strided_slice %1 {offsets = [0, 0], sizes = [7, 128], strides = [1, 1]} : vector<8x128xf32> to vector<7x128xf32>
    %15 = tpu.concatenate %7, %14 in 0 : vector<1x128xf32>, vector<7x128xf32> -> vector<8x128xf32>
    %c0_9 = arith.constant 0 : index
    %c0_10 = arith.constant 0 : index
    %16 = vector.load %arg8[%c0_9, %c0_10] : memref<8x384xf32, #tpu.memory_space<vmem>>, vector<8x128xf32>
    tpu.vector_store %arg8[%c0_9, %c0_10], %15 {strides = array<i32>} : memref<8x384xf32, #tpu.memory_space<vmem>>, vector<8x128xf32>,
    %c0_11 = arith.constant 0 : index
    %c128 = arith.constant 128 : index
    %17 = vector.load %arg8[%c0_11, %c128] : memref<8x384xf32, #tpu.memory_space<vmem>>, vector<8x128xf32>
    tpu.vector_store %arg8[%c0_11, %c128], %1 {strides = array<i32>} : memref<8x384xf32, #tpu.memory_space<vmem>>, vector<8x128xf32>,
    %18 = vector.extract_strided_slice %1 {offsets = [1, 0], sizes = [7, 128], strides = [1, 1]} : vector<8x128xf32> to vector<7x128xf32>
    %19 = tpu.concatenate %18, %13 in 0 : vector<7x128xf32>, vector<1x128xf32> -> vector<8x128xf32>
    %c0_12 = arith.constant 0 : index
    %c256 = arith.constant 256 : index
    %20 = vector.load %arg8[%c0_12, %c256] : memref<8x384xf32, #tpu.memory_space<vmem>>, vector<8x128xf32>
    tpu.vector_store %arg8[%c0_12, %c256], %19 {strides = array<i32>} : memref<8x384xf32, #tpu.memory_space<vmem>>, vector<8x128xf32>,
    %c0_13 = arith.constant 0 : index
    %c0_14 = arith.constant 0 : index
    %21 = vector.load %arg8[%c0_13, %c0_14] : memref<8x384xf32, #tpu.memory_space<vmem>>, vector<8x384xf32>
    %c0_15 = arith.constant 0 : index
    %c0_16 = arith.constant 0 : index
    %22 = vector.load %arg5[%c0_15, %c0_16] : memref<384x128xf32, #tpu.memory_space<vmem>>, vector<384x128xf32>
    %cst_17 = arith.constant dense<0.000000e+00> : vector<8x128xf32>
    %23 = tpu.matmul %21, %22, %cst_17 {dimension_numbers = #tpu.dot_dimension_numbers<[1], [0], [0], [1], [0, 0, 1, 1], [], []>} : vector<8x384xf32>, vector<384x128xf32>, vector<8x128xf32> -> vector<8x128xf32>
    %c0_18 = arith.constant 0 : index
    %c0_19 = arith.constant 0 : index
    %24 = vector.load %arg6[%c0_18, %c0_19] : memref<8x128xf32, #tpu.memory_space<vmem>>, vector<1x128xf32>
    %25 = vector.shape_cast %24 : vector<1x128xf32> to vector<128xf32>
    %26 = vector.shape_cast %25 : vector<128xf32> to vector<1x128xf32>
    %27 = vector.broadcast %26 : vector<1x128xf32> to vector<8x128xf32>
    %28 = arith.addf %23, %27 : vector<8x128xf32>
    %cst_20 = arith.constant 5.000000e-01 : f32
    %29 = vector.broadcast %cst_20 : f32 to vector<8x128xf32>
    %30 = arith.mulf %29, %28 : vector<8x128xf32>
    %cst_21 = arith.constant 0.707106769 : f32
    %31 = vector.broadcast %cst_21 : f32 to vector<8x128xf32>
    %32 = arith.mulf %28, %31 : vector<8x128xf32>
    %33 = math.erf %32 : vector<8x128xf32>
    %cst_22 = arith.constant 1.000000e+00 : f32
    %34 = vector.broadcast %cst_22 : f32 to vector<8x128xf32>
    %35 = arith.addf %34, %33 : vector<8x128xf32>
    %36 = arith.mulf %30, %35 : vector<8x128xf32>
    %37 = arith.addf %36, %1 : vector<8x128xf32>
    %cst_23 = arith.constant dense<0.000000e+00> : vector<8xf32>
    %38 = vector.multi_reduction <add>, %37, %cst_23 [1] : vector<8x128xf32> to vector<8xf32>
    %39 = vector.shape_cast %38 : vector<8xf32> to vector<8x1xf32>
    %cst_24 = arith.constant 3.125000e-02 : f32
    %40 = vector.broadcast %cst_24 : f32 to vector<8x1xf32>
    %41 = arith.mulf %39, %40 : vector<8x1xf32>
    %42 = arith.mulf %37, %37 : vector<8x128xf32>
    %cst_25 = arith.constant dense<0.000000e+00> : vector<8xf32>
    %43 = vector.multi_reduction <add>, %42, %cst_25 [1] : vector<8x128xf32> to vector<8xf32>
    %44 = vector.shape_cast %43 : vector<8xf32> to vector<8x1xf32>
    %cst_26 = arith.constant 3.125000e-02 : f32
    %45 = vector.broadcast %cst_26 : f32 to vector<8x1xf32>
    %46 = arith.mulf %44, %45 : vector<8x1xf32>
    %47 = arith.mulf %41, %41 : vector<8x1xf32>
    %48 = arith.subf %46, %47 : vector<8x1xf32>
    %49 = vector.broadcast %41 : vector<8x1xf32> to vector<8x128xf32>
    %50 = arith.subf %37, %49 : vector<8x128xf32>
    %cst_27 = arith.constant 9.99999974E-6 : f32
    %51 = vector.broadcast %cst_27 : f32 to vector<8x1xf32>
    %52 = arith.addf %48, %51 : vector<8x1xf32>
    %53 = math.rsqrt %52 : vector<8x1xf32>
    %54 = vector.broadcast %53 : vector<8x1xf32> to vector<8x128xf32>
    %55 = arith.mulf %50, %54 : vector<8x128xf32>
    %c1 = arith.constant 1 : index
    %c0_28 = arith.constant 0 : index
    %56 = vector.load %arg6[%c1, %c0_28] : memref<8x128xf32, #tpu.memory_space<vmem>>, vector<1x128xf32>
    %57 = vector.shape_cast %56 : vector<1x128xf32> to vector<128xf32>
    %58 = vector.shape_cast %57 : vector<128xf32> to vector<1x128xf32>
    %59 = vector.broadcast %58 : vector<1x128xf32> to vector<8x128xf32>
    %60 = arith.mulf %55, %59 : vector<8x128xf32>
    %c2 = arith.constant 2 : index
    %c0_29 = arith.constant 0 : index
    %61 = vector.load %arg6[%c2, %c0_29] : memref<8x128xf32, #tpu.memory_space<vmem>>, vector<1x128xf32>
    %62 = vector.shape_cast %61 : vector<1x128xf32> to vector<128xf32>
    %63 = vector.shape_cast %62 : vector<128xf32> to vector<1x128xf32>
    %64 = vector.broadcast %63 : vector<1x128xf32> to vector<8x128xf32>
    %65 = arith.addf %60, %64 : vector<8x128xf32>
    %c0_30 = arith.constant 0 : index
    %c0_31 = arith.constant 0 : index
    %c0_32 = arith.constant 0 : index
    %66 = vector.load %arg7[%c0_30, %c0_31, %c0_32] : memref<1x8x128xf32, #tpu.memory_space<vmem>>, vector<1x8x128xf32>
    %67 = vector.shape_cast %66 : vector<1x8x128xf32> to vector<8x128xf32>
    %68 = vector.shape_cast %65 : vector<8x128xf32> to vector<1x8x128xf32>
    tpu.vector_store %arg7[%c0_30, %c0_31, %c0_32], %68 {strides = array<i32>} : memref<1x8x128xf32, #tpu.memory_space<vmem>>, vector<1x8x128xf32>,
    return
  }
  func.func @transform_0(%arg0: i32, %arg1: i32) -> (i32, i32, i32) {
    %c0_i32 = arith.constant 0 : i32
    %c0_i32_0 = arith.constant 0 : i32
    return %arg0, %arg1, %c0_i32 : i32, i32, i32
  }
  func.func @transform_1(%arg0: i32, %arg1: i32) -> (i32, i32, i32) {
    %c1_i32 = arith.constant 1 : i32
    %0 = arith.muli %arg1, %c1_i32 : i32
    %c1_i32_0 = arith.constant 1 : i32
    %1 = arith.subi %0, %c1_i32_0 : i32
    %c0_i32 = arith.constant 0 : i32
    %2 = arith.maxsi %1, %c0_i32 : i32
    %c0_i32_1 = arith.constant 0 : i32
    %c0_i32_2 = arith.constant 0 : i32
    return %arg0, %2, %c0_i32_1 : i32, i32, i32
  }
  func.func @transform_2(%arg0: i32, %arg1: i32) -> (i32, i32, i32) {
    %c1_i32 = arith.constant 1 : i32
    %0 = arith.addi %arg1, %c1_i32 : i32
    %c1_i32_0 = arith.constant 1 : i32
    %1 = arith.muli %0, %c1_i32_0 : i32
    %c3_i32 = arith.constant 3 : i32
    %2 = arith.minsi %1, %c3_i32 : i32
    %c0_i32 = arith.constant 0 : i32
    %c0_i32_1 = arith.constant 0 : i32
    return %arg0, %2, %c0_i32 : i32, i32, i32
  }
  func.func @transform_3(%arg0: i32, %arg1: i32) -> (i32, i32) {
    %c0_i32 = arith.constant 0 : i32
    %c0_i32_0 = arith.constant 0 : i32
    %c0_i32_1 = arith.constant 0 : i32
    return %c0_i32, %c0_i32_0 : i32, i32
  }
  func.func @transform_4(%arg0: i32, %arg1: i32) -> (i32, i32) {
    %c0_i32 = arith.constant 0 : i32
    %c0_i32_0 = arith.constant 0 : i32
    %c0_i32_1 = arith.constant 0 : i32
    return %c0_i32, %c0_i32_0 : i32, i32
  }
  func.func @transform_5(%arg0: i32, %arg1: i32) -> (i32, i32, i32) {
    %c0_i32 = arith.constant 0 : i32
    %c0_i32_0 = arith.constant 0 : i32
    return %arg0, %arg1, %c0_i32 : i32, i32, i32
  }
}

</mosaic_0001>

<llo_original>
// kernel: tpu_custom_call.1
$region0: #{tpu_custom_call.1}
  #allocation0 [shape = 'u32[]', space=smem, size = 0x4, offset = 0x4, fixed_abs, tag = 'smem constant byte address 0x4 - core index']
  #allocation1 [shape = 'u32[144,128]{1,0:T(1,128)}', space=vmem, size = 0x12000, scoped, tag = 'internal scratch']
  #allocation2 [shape = 'f32[8,384]{1,0:T(8,128)}', space=vmem, size = 0x3000, scoped, tag = 'scratch operand']
  %s0 = inlined_call_operand.hbm [shape: f32[2,32,128], index: 0, kind: input, shape index: {}]
  %s1 = inlined_call_operand.hbm [shape: f32[2,32,128], index: 1, kind: input, shape index: {}]
  %s2 = inlined_call_operand.hbm [shape: f32[2,32,128], index: 2, kind: input, shape index: {}]
  %s3 = inlined_call_operand.hbm [shape: f32[384,128], index: 3, kind: input, shape index: {}]
  %s4 = inlined_call_operand.vmem [shape: f32[8,128], index: 4, kind: input, shape index: {}]
  %s5 = inlined_call_operand.hbm [shape: f32[2,32,128], index: 5, kind: output, shape index: {}]
  %s6 = sld [smem:[#allocation0]]
  $region69: #{tpu_custom_call.1} parent=0
    _
  %s8 = ssub.s32 1, %s6
  %s9 = scalar_select 0, %s8, %s6
  $region1: #{tpu_custom_call.1} parent=0
    #allocation3 [shape = 'u8[8192]{0}', space=vmem, size = 0x2000, scoped, tag = 'input window, operand 0']
    #allocation4 [shape = 's32[2]{0}', space=sflag, size = 0x8, scoped, tag = 'scoped memory for tpu_custom_call.1']
    #allocation5 [shape = 's32[2]{0}', space=sflag, size = 0x8, scoped, tag = 'scoped memory for tpu_custom_call.1']
    #allocation6 [shape = 'u8[8192]{0}', space=vmem, size = 0x2000, scoped, tag = 'input window, operand 1']
    #allocation7 [shape = 's32[2]{0}', space=sflag, size = 0x8, scoped, tag = 'scoped memory for tpu_custom_call.1']
    #allocation8 [shape = 'u8[8192]{0}', space=vmem, size = 0x2000, scoped, tag = 'input window, operand 2']
    #allocation9 [shape = 'u8[196608]{0}', space=vmem, size = 0x30000, scoped, tag = 'input window, operand 3, single buffered']
    #allocation10 [shape = 's32[1]{0}', space=sflag, size = 0x4, scoped, tag = 'scoped memory for tpu_custom_call.1']
    #allocation11 [shape = 'u8[8192]{0}', space=vmem, size = 0x2000, scoped, tag = 'output window, operand 0']
    %10 = vsyncpa [#allocation4], 0
    %s11 = scalar_lea.sflag [#allocation4], 1
    %12 = vsyncpa %s11, 0
    %13 = vsyncpa [#allocation7], 0
    %s14 = scalar_lea.sflag [#allocation7], 1
    %15 = vsyncpa %s14, 0
    %16 = vsyncpa [#allocation10], 0
    %17 = vsyncpa [#allocation5], 0
    %s18 = scalar_lea.sflag [#allocation5], 1
    %19 = vsyncpa %s18, 0
    loop: start=0, step=1, limit=10
    $region2: #{tpu_custom_call.1} parent=1 // loop_pre_header
      _
    $region3: #{tpu_custom_call.1} parent=1 // loop_header
      %s21 = sphi 0, %s25
      %p22 = scmp.ge.s32.totalorder %s21, 10
      %s28 = sphi 0, %s40
      %s29 = sphi 0, %s36
      %s30 = sphi 0, %s28
      %s31 = sphi 0, %s29
      %s32 = sphi 0, %s30
      %s33 = sphi 0, %s31
      %s45 = sphi 0, %s47
      %s48 = sphi 0, %s45
      %s49 = sphi 0, %s48
      %s65 = sphi 0, %s49
      %s79 = sphi 0, %s81
      %s82 = sphi 0, %s79
      %s83 = sphi 0, %s82
      %s99 = sphi 0, %s83
      %s113 = sphi 0, %s115
      %s116 = sphi 0, %s113
      %s117 = sphi 0, %s116
      %s133 = sphi 0, %s117
      %s137 = sphi 0, %s137
      %s139 = sphi 0, %s137
      %s140 = sphi 0, %s139
      %s154 = sphi 0, %s140
      %s158 = sphi 0, %s158
      %s160 = sphi 0, %s158
      %s161 = sphi 0, %s160
      %s175 = sphi 0, %s161
      %s183 = sphi 0, %s185
      %s186 = sphi 0, %s183
      %s187 = sphi 0, %s186
      %s203 = sphi 0, %s187
    $region4: #{tpu_custom_call.1} parent=1 // loop_header_branch
      %24 = sbr.rel (%p22) target = $region8
    $region5: #{tpu_custom_call.1} parent=1 // loop_body
      %s26 = ssub.s32 %s21, 1
      %s27 = ssub.s32 %s21, 2
      %s34 = sadd.s32 1, %s29
      %p35 = scmp.ge.s32.totalorder %s34, 4
      %s36 = scalar_select %p35, 0, %s34
      %s37 = sadd.s32 1, %s28
      %s38 = scalar_select %p35, %s37, %s28
      %p39 = scmp.ge.s32.totalorder %s38, 2
      %s40 = scalar_select %p39, 0, %s38
      %s41 = ssub.s32 %s28, %s40
      %s42 = ssub.s32 %s29, %s36
      %s43 = sor.u32 %s41, %s42
      %p44 = scmp.eq.s32.totalorder %s43, 0
      %s46 = sadd.s32 %s45, 1
      %s47 = scalar_select %p44, %s45, %s46
      %p50 = pneg %p44
      %p51 = scmp.eq.s32.totalorder %s21, 7
      %p52 = por %p50, %p51
      %p53 = scmp.ne.s32.totalorder %s45, %s48
      %p54 = scmp.eq.s32.totalorder %s21, 0
      %p55 = por %p53, %p54
      %p56 = scmp.ne.s32.totalorder %s45, %s48
      %p57 = scmp.eq.s32.totalorder %s26, 7
      %p58 = por %p56, %p57
      %p59 = scmp.ne.s32.totalorder %s48, %s49
      %p60 = scmp.eq.s32.totalorder %s26, 0
      %p61 = por %p59, %p60
      %p62 = scmp.ne.s32.totalorder %s48, %s49
      %p63 = scmp.eq.s32.totalorder %s27, 7
      %p64 = por %p62, %p63
      %p66 = scmp.ne.s32.totalorder %s49, %s65
      %p67 = scmp.eq.s32.totalorder %s27, 0
      %p68 = por %p66, %p67
      %s69 = ssub.s32 %s29, 1
      %p70 = scmp.gt.s32.totalorder %s69, 0
      %s71 = scalar_select %p70, %s69, 0
      %s72 = ssub.s32 %s36, 1
      %p73 = scmp.gt.s32.totalorder %s72, 0
      %s74 = scalar_select %p73, %s72, 0
      %s75 = ssub.s32 %s28, %s40
      %s76 = ssub.s32 %s71, %s74
      %s77 = sor.u32 %s75, %s76
      %p78 = scmp.eq.s32.totalorder %s77, 0
      %s80 = sadd.s32 %s79, 1
      %s81 = scalar_select %p78, %s79, %s80
      %p84 = pneg %p78
      %p85 = scmp.eq.s32.totalorder %s21, 7
      %p86 = por %p84, %p85
      %p87 = scmp.ne.s32.totalorder %s79, %s82
      %p88 = scmp.eq.s32.totalorder %s21, 0
      %p89 = por %p87, %p88
      %p90 = scmp.ne.s32.totalorder %s79, %s82
      %p91 = scmp.eq.s32.totalorder %s26, 7
      %p92 = por %p90, %p91
      %p93 = scmp.ne.s32.totalorder %s82, %s83
      %p94 = scmp.eq.s32.totalorder %s26, 0
      %p95 = por %p93, %p94
      %p96 = scmp.ne.s32.totalorder %s82, %s83
      %p97 = scmp.eq.s32.totalorder %s27, 7
      %p98 = por %p96, %p97
      %p100 = scmp.ne.s32.totalorder %s83, %s99
      %p101 = scmp.eq.s32.totalorder %s27, 0
      %p102 = por %p100, %p101
      %s103 = sadd.s32 %s29, 1
      %p104 = scmp.lt.s32.totalorder %s103, 3
      %s105 = scalar_select %p104, %s103, 3
      %s106 = sadd.s32 %s36, 1
      %p107 = scmp.lt.s32.totalorder %s106, 3
      %s108 = scalar_select %p107, %s106, 3
      %s109 = ssub.s32 %s28, %s40
      %s110 = ssub.s32 %s105, %s108
      %s111 = sor.u32 %s109, %s110
      %p112 = scmp.eq.s32.totalorder %s111, 0
      %s114 = sadd.s32 %s113, 1
      %s115 = scalar_select %p112, %s113, %s114
      %p118 = pneg %p112
      %p119 = scmp.eq.s32.totalorder %s21, 7
      %p120 = por %p118, %p119
      %p121 = scmp.ne.s32.totalorder %s113, %s116
      %p122 = scmp.eq.s32.totalorder %s21, 0
      %p123 = por %p121, %p122
      %p124 = scmp.ne.s32.totalorder %s113, %s116
      %p125 = scmp.eq.s32.totalorder %s26, 7
      %p126 = por %p124, %p125
      %p127 = scmp.ne.s32.totalorder %s116, %s117
      %p128 = scmp.eq.s32.totalorder %s26, 0
      %p129 = por %p127, %p128
      %p130 = scmp.ne.s32.totalorder %s116, %s117
      %p131 = scmp.eq.s32.totalorder %s27, 7
      %p132 = por %p130, %p131
      %p134 = scmp.ne.s32.totalorder %s117, %s133
      %p135 = scmp.eq.s32.totalorder %s27, 0
      %p136 = por %p134, %p135
      %s138 = sadd.s32 %s137, 1
      %p141 = scmp.eq.s32.totalorder %s21, 7
      %p142 = scmp.ne.s32.totalorder %s137, %s139
      %p143 = scmp.eq.s32.totalorder %s21, 0
      %p144 = por %p142, %p143
      %p145 = scmp.ne.s32.totalorder %s137, %s139
      %p146 = scmp.eq.s32.totalorder %s26, 7
      %p147 = por %p145, %p146
      %p148 = scmp.ne.s32.totalorder %s139, %s140
      %p149 = scmp.eq.s32.totalorder %s26, 0
      %p150 = por %p148, %p149
      %p151 = scmp.ne.s32.totalorder %s139, %s140
      %p152 = scmp.eq.s32.totalorder %s27, 7
      %p153 = por %p151, %p152
      %p155 = scmp.ne.s32.totalorder %s140, %s154
      %p156 = scmp.eq.s32.totalorder %s27, 0
      %p157 = por %p155, %p156
      %s159 = sadd.s32 %s158, 1
      %p162 = scmp.eq.s32.totalorder %s21, 7
      %p163 = scmp.ne.s32.totalorder %s158, %s160
      %p164 = scmp.eq.s32.totalorder %s21, 0
      %p165 = por %p163, %p164
      %p166 = scmp.ne.s32.totalorder %s158, %s160
      %p167 = scmp.eq.s32.totalorder %s26, 7
      %p168 = por %p166, %p167
      %p169 = scmp.ne.s32.totalorder %s160, %s161
      %p170 = scmp.eq.s32.totalorder %s26, 0
      %p171 = por %p169, %p170
      %p172 = scmp.ne.s32.totalorder %s160, %s161
      %p173 = scmp.eq.s32.totalorder %s27, 7
      %p174 = por %p172, %p173
      %p176 = scmp.ne.s32.totalorder %s161, %s175
      %p177 = scmp.eq.s32.totalorder %s27, 0
      %p178 = por %p176, %p177
      %s179 = ssub.s32 %s28, %s40
      %s180 = ssub.s32 %s29, %s36
      %s181 = sor.u32 %s179, %s180
      %p182 = scmp.eq.s32.totalorder %s181, 0
      %s184 = sadd.s32 %s183, 1
      %s185 = scalar_select %p182, %s183, %s184
      %p188 = pneg %p182
      %p189 = scmp.eq.s32.totalorder %s21, 7
      %p190 = por %p188, %p189
      %p191 = scmp.ne.s32.totalorder %s183, %s186
      %p192 = scmp.eq.s32.totalorder %s21, 0
      %p193 = por %p191, %p192
      %p194 = scmp.ne.s32.totalorder %s183, %s186
      %p195 = scmp.eq.s32.totalorder %s26, 7
      %p196 = por %p194, %p195
      %p197 = scmp.ne.s32.totalorder %s186, %s187
      %p198 = scmp.eq.s32.totalorder %s26, 0
      %p199 = por %p197, %p198
      %p200 = scmp.ne.s32.totalorder %s186, %s187
      %p201 = scmp.eq.s32.totalorder %s27, 7
      %p202 = por %p200, %p201
      %p204 = scmp.ne.s32.totalorder %s187, %s203
      %p205 = scmp.eq.s32.totalorder %s27, 0
      %p206 = por %p204, %p205
      %p207 = scmp.le.s32.totalorder 1, %s21
      %p208 = scmp.lt.s32.totalorder %s21, 9
      %p209 = pnand %p207, %p208
      %p210 = pneg %p209
      // Predicated region
      $region9: #{tpu_custom_call.1} parent=5 // pred_check
        _
      $region10: #{tpu_custom_call.1} parent=5 // pred_check_branch
        %212 = sbr.rel (%p209) target = $region12
      $region11: #{tpu_custom_call.1} parent=5 // pred_region
        %s213 = ssub.s32 %s21, 1
        // Predicated region
        $region13: #{tpu_custom_call.1} parent=11 // pred_check
          %p214 = pneg %p150
        $region14: #{tpu_custom_call.1} parent=11 // pred_check_branch
          %216 = sbr.rel (%p214) target = $region16
        $region15: #{tpu_custom_call.1} parent=11 // pred_region
          %s218 = ssub.s32 6144, 6144
          %219 = vsyncadd [#allocation10], %s218
          %s220 = sshll.u32 [#allocation9], 4
          %s221 = int_to_ptr.vmem [resolvable:$true] %s220
          %226 = dma.hbm_to_vmem [thread:$0]  %s3, 6144, %s221, [#allocation10], 128, 128, 8
        $region16: #{tpu_custom_call.1} parent=11 // pred_fallthru
          _
        // Predicated region
        $region17: #{tpu_custom_call.1} parent=11 // pred_check
          %p227 = pneg %p171
        $region18: #{tpu_custom_call.1} parent=11 // pred_check_branch
          %229 = sbr.rel (%p227) target = $region20
        $region19: #{tpu_custom_call.1} parent=11 // pred_region
          _
        $region20: #{tpu_custom_call.1} parent=11 // pred_fallthru
          _
      $region12: #{tpu_custom_call.1} parent=5 // pred_fallthru
        _
      %p230 = scmp.lt.s32.totalorder %s21, 8
      // Predicated region
      $region21: #{tpu_custom_call.1} parent=5 // pred_check
        %p231 = pneg %p230
      $region22: #{tpu_custom_call.1} parent=5 // pred_check_branch
        %233 = sbr.rel (%p231) target = $region24
      $region23: #{tpu_custom_call.1} parent=5 // pred_region
        // Predicated region
        $region25: #{tpu_custom_call.1} parent=23 // pred_check
          %p234 = pneg %p55
        $region26: #{tpu_custom_call.1} parent=23 // pred_check_branch
          %236 = sbr.rel (%p234) target = $region28
        $region27: #{tpu_custom_call.1} parent=23 // pred_region
          %s237 = sand.u32 %s45, 1
          %s238 = scalar_lea.sflag [#allocation4], %s237
          %s239 = sand.u32 %s45, 1
          %s240 = smul.addr %s239, 8
          %s241 = scalar_lea.vmem [#allocation3], %s240
          %s243 = ssub.s32 128, 128
          %244 = vsyncadd %s238, %s243
          %s245 = smul.addr %s28, 4
          %s246 = sadd.s32 %s29, %s245
          %s247 = smul.addr %s246, 128
          %s248 = scalar_lea.hbm %s0, %s247
          %s250 = sshll.u32 %s241, 4
          %s251 = int_to_ptr.vmem [resolvable:$true] %s250
          %253 = dma.hbm_to_vmem [thread:$0]  %s248, 128, %s251, %s238
        $region28: #{tpu_custom_call.1} parent=23 // pred_fallthru
          _
        // Predicated region
        $region29: #{tpu_custom_call.1} parent=23 // pred_check
          %p254 = pneg %p89
        $region30: #{tpu_custom_call.1} parent=23 // pred_check_branch
          %256 = sbr.rel (%p254) target = $region32
        $region31: #{tpu_custom_call.1} parent=23 // pred_region
          %s257 = sand.u32 %s21, 1
          %s258 = scalar_lea.sflag [#allocation7], %s257
          %s259 = sand.u32 %s79, 1
          %s260 = smul.addr %s259, 8
          %s261 = scalar_lea.vmem [#allocation6], %s260
          %s262 = ssub.s32 %s29, 1
          %p263 = scmp.gt.s32.totalorder %s262, 0
          %s264 = scalar_select %p263, %s262, 0
          %s266 = ssub.s32 128, 128
          %267 = vsyncadd %s258, %s266
          %s268 = smul.addr %s28, 4
          %s269 = sadd.s32 %s264, %s268
          %s270 = smul.addr %s269, 128
          %s271 = scalar_lea.hbm %s1, %s270
          %s273 = sshll.u32 %s261, 4
          %s274 = int_to_ptr.vmem [resolvable:$true] %s273
          %276 = dma.hbm_to_vmem [thread:$0]  %s271, 128, %s274, %s258
        $region32: #{tpu_custom_call.1} parent=23 // pred_fallthru
          _
        // Predicated region
        $region33: #{tpu_custom_call.1} parent=23 // pred_check
          %p277 = pneg %p123
        $region34: #{tpu_custom_call.1} parent=23 // pred_check_branch
          %279 = sbr.rel (%p277) target = $region36
        $region35: #{tpu_custom_call.1} parent=23 // pred_region
          %s280 = sand.u32 %s21, 1
          %s281 = scalar_lea.sflag [#allocation7], %s280
          %s282 = sand.u32 %s113, 1
          %s283 = smul.addr %s282, 8
          %s284 = scalar_lea.vmem [#allocation8], %s283
          %s285 = sadd.s32 %s29, 1
          %p286 = scmp.lt.s32.totalorder %s285, 3
          %s287 = scalar_select %p286, %s285, 3
          %s289 = ssub.s32 128, 128
          %290 = vsyncadd %s281, %s289
          %s291 = smul.addr %s28, 4
          %s292 = sadd.s32 %s287, %s291
          %s293 = smul.addr %s292, 128
          %s294 = scalar_lea.hbm %s2, %s293
          %s296 = sshll.u32 %s284, 4
          %s297 = int_to_ptr.vmem [resolvable:$true] %s296
          %299 = dma.hbm_to_vmem [thread:$0]  %s294, 128, %s297, %s281
        $region36: #{tpu_custom_call.1} parent=23 // pred_fallthru
          _
      $region24: #{tpu_custom_call.1} parent=5 // pred_fallthru
        _
      %p300 = scmp.le.s32.totalorder 1, %s21
      %p301 = scmp.lt.s32.totalorder %s21, 9
      %p302 = pnand %p300, %p301
      %p303 = pneg %p302
      // Predicated region
      $region37: #{tpu_custom_call.1} parent=5 // pred_check
        _
      $region38: #{tpu_custom_call.1} parent=5 // pred_check_branch
        %305 = sbr.rel (%p302) target = $region40
      $region39: #{tpu_custom_call.1} parent=5 // pred_region
        %s306 = ssub.s32 %s21, 1
        %s307 = sand.u32 %s48, 1
        %s308 = scalar_lea.sflag [#allocation4], %s307
        %s309 = sand.u32 %s48, 1
        %s310 = smul.addr %s309, 8
        %s311 = scalar_lea.vmem [#allocation3], %s310
        // Predicated region
        $region41: #{tpu_custom_call.1} parent=39 // pred_check
          %p312 = pneg %p61
        $region42: #{tpu_custom_call.1} parent=39 // pred_check_branch
          %314 = sbr.rel (%p312) target = $region44
        $region43: #{tpu_custom_call.1} parent=39 // pred_region
          %315 = dma.done %s308, 128
        $region44: #{tpu_custom_call.1} parent=39 // pred_fallthru
          _
        %s316 = sand.u32 %s26, 1
        %s317 = scalar_lea.sflag [#allocation7], %s316
        %s318 = sand.u32 %s82, 1
        %s319 = smul.addr %s318, 8
        %s320 = scalar_lea.vmem [#allocation6], %s319
        // Predicated region
        $region45: #{tpu_custom_call.1} parent=39 // pred_check
          %p321 = pneg %p95
        $region46: #{tpu_custom_call.1} parent=39 // pred_check_branch
          %323 = sbr.rel (%p321) target = $region48
        $region47: #{tpu_custom_call.1} parent=39 // pred_region
          %324 = dma.done %s317, 128
        $region48: #{tpu_custom_call.1} parent=39 // pred_fallthru
          _
        %s325 = sand.u32 %s26, 1
        %s326 = scalar_lea.sflag [#allocation7], %s325
        %s327 = sand.u32 %s116, 1
        %s328 = smul.addr %s327, 8
        %s329 = scalar_lea.vmem [#allocation8], %s328
        // Predicated region
        $region49: #{tpu_custom_call.1} parent=39 // pred_check
          %p330 = pneg %p129
        $region50: #{tpu_custom_call.1} parent=39 // pred_check_branch
          %332 = sbr.rel (%p330) target = $region52
        $region51: #{tpu_custom_call.1} parent=39 // pred_region
          %333 = dma.done %s326, 128
        $region52: #{tpu_custom_call.1} parent=39 // pred_fallthru
          _
        // Predicated region
        $region53: #{tpu_custom_call.1} parent=39 // pred_check
          %p334 = pneg %p150
        $region54: #{tpu_custom_call.1} parent=39 // pred_check_branch
          %336 = sbr.rel (%p334) target = $region56
        $region55: #{tpu_custom_call.1} parent=39 // pred_region
          %337 = dma.done [#allocation10], 6144
        $region56: #{tpu_custom_call.1} parent=39 // pred_fallthru
          _
        %s338 = sand.u32 %s48, 1
        %s339 = scalar_lea.sflag [#allocation4], %s338
        %s340 = sand.u32 %s48, 1
        %s341 = smul.addr %s340, 8
        %s342 = scalar_lea.vmem [#allocation3], %s341
        %p343 = pneg %p61
        %p344 = pneg %p58
        %s345 = sand.u32 %s26, 1
        %s346 = scalar_lea.sflag [#allocation7], %s345
        %s347 = sand.u32 %s82, 1
        %s348 = smul.addr %s347, 8
        %s349 = scalar_lea.vmem [#allocation6], %s348
        %p350 = pneg %p95
        %p351 = pneg %p92
        %s352 = sand.u32 %s26, 1
        %s353 = scalar_lea.sflag [#allocation7], %s352
        %s354 = sand.u32 %s116, 1
        %s355 = smul.addr %s354, 8
        %s356 = scalar_lea.vmem [#allocation8], %s355
        %p357 = pneg %p129
        %p358 = pneg %p126
        %p359 = pneg %p150
        %p360 = pneg %p147
        %p361 = pneg %p171
        %p362 = pneg %p168
        %p363 = pneg %p199
        %p364 = pneg %p196
        %s365 = sand.u32 %s186, 1
        %s366 = scalar_lea.sflag [#allocation5], %s365
        %s367 = sand.u32 %s186, 1
        %s368 = smul.addr %s367, 8
        %s369 = scalar_lea.vmem [#allocation11], %s368
        %s370 = ssub.s32 %s31, 1
        %p371 = scmp.gt.s32.totalorder %s370, 0
        %s372 = scalar_select %p371, %s370, 0
        %s373 = sadd.s32 %s31, 1
        %p374 = scmp.lt.s32.totalorder %s373, 3
        %s375 = scalar_select %p374, %s373, 3
        %v376 = vld [vmem:[%s311] sm:$0xff]
        %v377 = vld [vmem:[%s320] sm:$0xff]
        %p378 = scmp.gt.s32.totalorder %s31, 0
        %s379 = scalar_select %p378, 1, 0
        %v380 = vstv %s379
        %vm381 = vcmp.eq.s32.totalorder %v380, 1
        %v382 = vsel %vm381, %v377, 0.0
        %v383 = vld [vmem:[%s329] sm:$0xff]
        %p384 = scmp.lt.s32.totalorder %s31, 3
        %s385 = scalar_select %p384, 1, 0
        %v386 = vstv %s385
        %vm387 = vcmp.eq.s32.totalorder %v386, 1
        %v388 = vsel %vm387, %v383, 0.0
        %v390 = vrot.slane %v382, 7
        %v393 = vrot.slane %v376, 7
        %vm395 = vcmask 1040384
        %v396 = vsel %vm395, %v390, %v393
        %397 = vst [vmem:[#allocation2] sm:$0xff] %v396
        %398 = vst [vmem:[#allocation2 + $0x8] sm:$0xff] %v376
        %v399 = vrot.slane %v376, 1
        %v402 = vrot.slane %v388, 1
        %vm404 = vcmask 1046528
        %v405 = vsel %vm404, %v399, %v402
        %406 = vst [vmem:[#allocation2 + $0x10] sm:$0xff] %v405
        %v407 = vld [vmem:[#allocation2] sm:$0xff]
        %v408 = vld [vmem:[#allocation2 + $0x8] sm:$0xff]
        %v409 = vld [vmem:[#allocation2 + $0x10] sm:$0xff]
        %v410 = vld [vmem:[#allocation9] sm:$0xff]
        %v411 = vld [vmem:[#allocation9 + $0x8] sm:$0xff]
        %v412 = vld [vmem:[#allocation9 + $0x10] sm:$0xff]
        %v413 = vld [vmem:[#allocation9 + $0x18] sm:$0xff]
        %v414 = vld [vmem:[#allocation9 + $0x20] sm:$0xff]
        %v415 = vld [vmem:[#allocation9 + $0x28] sm:$0xff]
        %v416 = vld [vmem:[#allocation9 + $0x30] sm:$0xff]
        %v417 = vld [vmem:[#allocation9 + $0x38] sm:$0xff]
        %v418 = vld [vmem:[#allocation9 + $0x40] sm:$0xff]
        %v419 = vld [vmem:[#allocation9 + $0x48] sm:$0xff]
        %v420 = vld [vmem:[#allocation9 + $0x50] sm:$0xff]
        %v421 = vld [vmem:[#allocation9 + $0x58] sm:$0xff]
        %v422 = vld [vmem:[#allocation9 + $0x60] sm:$0xff]
        %v423 = vld [vmem:[#allocation9 + $0x68] sm:$0xff]
        %v424 = vld [vmem:[#allocation9 + $0x70] sm:$0xff]
        %v425 = vld [vmem:[#allocation9 + $0x78] sm:$0xff]
        %v426 = vld [vmem:[#allocation9 + $0x80] sm:$0xff]
        %v427 = vld [vmem:[#allocation9 + $0x88] sm:$0xff]
        %v428 = vld [vmem:[#allocation9 + $0x90] sm:$0xff]
        %v429 = vld [vmem:[#allocation9 + $0x98] sm:$0xff]
        %v430 = vld [vmem:[#allocation9 + $0xa0] sm:$0xff]
        %v431 = vld [vmem:[#allocation9 + $0xa8] sm:$0xff]
        %v432 = vld [vmem:[#allocation9 + $0xb0] sm:$0xff]
        %v433 = vld [vmem:[#allocation9 + $0xb8] sm:$0xff]
        %v434 = vld [vmem:[#allocation9 + $0xc0] sm:$0xff]
        %v435 = vld [vmem:[#allocation9 + $0xc8] sm:$0xff]
        %v436 = vld [vmem:[#allocation9 + $0xd0] sm:$0xff]
        %v437 = vld [vmem:[#allocation9 + $0xd8] sm:$0xff]
        %v438 = vld [vmem:[#allocation9 + $0xe0] sm:$0xff]
        %v439 = vld [vmem:[#allocation9 + $0xe8] sm:$0xff]
        %v440 = vld [vmem:[#allocation9 + $0xf0] sm:$0xff]
        %v441 = vld [vmem:[#allocation9 + $0xf8] sm:$0xff]
        %v442 = vld [vmem:[#allocation9 + $0x100] sm:$0xff]
        %v443 = vld [vmem:[#allocation9 + $0x108] sm:$0xff]
        %v444 = vld [vmem:[#allocation9 + $0x110] sm:$0xff]
        %v445 = vld [vmem:[#allocation9 + $0x118] sm:$0xff]
        %v446 = vld [vmem:[#allocation9 + $0x120] sm:$0xff]
        %v447 = vld [vmem:[#allocation9 + $0x128] sm:$0xff]
        %v448 = vld [vmem:[#allocation9 + $0x130] sm:$0xff]
        %v449 = vld [vmem:[#allocation9 + $0x138] sm:$0xff]
        %v450 = vld [vmem:[#allocation9 + $0x140] sm:$0xff]
        %v451 = vld [vmem:[#allocation9 + $0x148] sm:$0xff]
        %v452 = vld [vmem:[#allocation9 + $0x150] sm:$0xff]
        %v453 = vld [vmem:[#allocation9 + $0x158] sm:$0xff]
        %v454 = vld [vmem:[#allocation9 + $0x160] sm:$0xff]
        %v455 = vld [vmem:[#allocation9 + $0x168] sm:$0xff]
        %v456 = vld [vmem:[#allocation9 + $0x170] sm:$0xff]
        %v457 = vld [vmem:[#allocation9 + $0x178] sm:$0xff]
        %v458 = vld [vmem:[%s4] sm:$0x1]
        %v459 = vlaneseq
        %v460 = vshrl.u32 %v459, 7
        %v461 = vsub.s32 0, %v460
        %v462 = vrot.slane %v458, %v461
        %463 = vmatprep.subr.mxu0 0.0
        %464 = vmatpush1.msra.mxu0 %v410
        %465 = vmatprep.subr.mxu0 0.0
        %466 = vmatpush1.msra.mxu0 %v411
        %467 = vmatprep.subr.mxu0 0.0
        %468 = vmatpush1.msra.mxu0 %v412
        %469 = vmatprep.subr.mxu0 0.0
        %470 = vmatpush1.msra.mxu0 %v413
        %471 = vmatprep.subr.mxu0 0.0
        %472 = vmatpush1.msra.mxu0 %v414
        %473 = vmatprep.subr.mxu0 0.0
        %474 = vmatpush1.msra.mxu0 %v415
        %475 = vmatprep.subr.mxu0 0.0
        %476 = vmatpush1.msra.mxu0 %v416
        %477 = vmatprep.subr.mxu0 0.0
        %478 = vmatpush1.msra.mxu0 %v417
        %479 = vmatprep.subr.mxu0 0.0
        %480 = vmatpush1.msra.mxu0 %v418
        %481 = vmatprep.subr.mxu0 0.0
        %482 = vmatpush1.msra.mxu0 %v419
        %483 = vmatprep.subr.mxu0 0.0
        %484 = vmatpush1.msra.mxu0 %v420
        %485 = vmatprep.subr.mxu0 0.0
        %486 = vmatpush1.msra.mxu0 %v421
        %487 = vmatprep.subr.mxu0 0.0
        %488 = vmatpush1.msra.mxu0 %v422
        %489 = vmatprep.subr.mxu0 0.0
        %490 = vmatpush1.msra.mxu0 %v423
        %491 = vmatprep.subr.mxu0 0.0
        %492 = vmatpush1.msra.mxu0 %v424
        %493 = vmatprep.subr.mxu0 0.0
        %494 = vmatpush1.msra.mxu0 %v425
        %495 = vmatprep.subr.mxu0 0.0
        %496 = vmatpush1.msra.mxu0 %v426
        %497 = vmatprep.subr.mxu0 0.0
        %498 = vmatpush1.msra.mxu0 %v427
        %499 = vmatprep.subr.mxu0 0.0
        %500 = vmatpush1.msra.mxu0 %v428
        %501 = vmatprep.subr.mxu0 0.0
        %502 = vmatpush1.msra.mxu0 %v429
        %503 = vmatprep.subr.mxu0 0.0
        %504 = vmatpush1.msra.mxu0 %v430
        %505 = vmatprep.subr.mxu0 0.0
        %506 = vmatpush1.msra.mxu0 %v431
        %507 = vmatprep.subr.mxu0 0.0
        %508 = vmatpush1.msra.mxu0 %v432
        %509 = vmatprep.subr.mxu0 0.0
        %510 = vmatpush1.msra.mxu0 %v433
        %511 = vmatprep.subr.mxu0 0.0
        %512 = vmatpush1.msra.mxu0 %v434
        %513 = vmatprep.subr.mxu0 0.0
        %514 = vmatpush1.msra.mxu0 %v435
        %515 = vmatprep.subr.mxu0 0.0
        %516 = vmatpush1.msra.mxu0 %v436
        %517 = vmatprep.subr.mxu0 0.0
        %518 = vmatpush1.msra.mxu0 %v437
        %519 = vmatprep.subr.mxu0 0.0
        %520 = vmatpush1.msra.mxu0 %v438
        %521 = vmatprep.subr.mxu0 0.0
        %522 = vmatpush1.msra.mxu0 %v439
        %523 = vmatprep.subr.mxu0 0.0
        %524 = vmatpush1.msra.mxu0 %v440
        %525 = vmatprep.subr.mxu0 0.0
        %526 = vmatpush1.msra.mxu0 %v441
        %527 = vmatprep.mubr.f32.mxu0 %v408
        %528 = vmatmul.mubr.f32.gmra.mrb[0].mxu0 %v407
        %v529 = vpop.f32.mrb[0].mxu0
        %v530 = vadd.f32 %v462, %v529
        %v531 = vpop.f32.mrb[0].mxu0
        %532 = vdwg.mxu0
        %533 = vmatprep.subr.mxu0 0.0
        %534 = vmatpush1.msra.mxu0 %v442
        %535 = vmatprep.subr.mxu0 0.0
        %536 = vmatpush1.msra.mxu0 %v443
        %537 = vmatprep.subr.mxu0 0.0
        %538 = vmatpush1.msra.mxu0 %v444
        %539 = vmatprep.subr.mxu0 0.0
        %540 = vmatpush1.msra.mxu0 %v445
        %541 = vmatprep.subr.mxu0 0.0
        %542 = vmatpush1.msra.mxu0 %v446
        %543 = vmatprep.subr.mxu0 0.0
        %544 = vmatpush1.msra.mxu0 %v447
        %545 = vmatprep.subr.mxu0 0.0
        %546 = vmatpush1.msra.mxu0 %v448
        %547 = vmatprep.subr.mxu0 0.0
        %548 = vmatpush1.msra.mxu0 %v449
        %549 = vmatprep.subr.mxu0 0.0
        %550 = vmatpush1.msra.mxu0 %v450
        %551 = vmatprep.subr.mxu0 0.0
        %552 = vmatpush1.msra.mxu0 %v451
        %553 = vmatprep.subr.mxu0 0.0
        %554 = vmatpush1.msra.mxu0 %v452
        %555 = vmatprep.subr.mxu0 0.0
        %556 = vmatpush1.msra.mxu0 %v453
        %557 = vmatprep.subr.mxu0 0.0
        %558 = vmatpush1.msra.mxu0 %v454
        %559 = vmatprep.subr.mxu0 0.0
        %560 = vmatpush1.msra.mxu0 %v455
        %561 = vmatprep.subr.mxu0 0.0
        %562 = vmatpush1.msra.mxu0 %v456
        %563 = vmatprep.subr.mxu0 0.0
        %564 = vmatpush1.msra.mxu0 %v457
        %565 = vmatprep.subr.mxu0 0.0
        %566 = vmatpush1.msra.mxu0 0.0
        %567 = vmatprep.subr.mxu0 0.0
        %568 = vmatpush1.msra.mxu0 0.0
        %569 = vmatprep.subr.mxu0 0.0
        %570 = vmatpush1.msra.mxu0 0.0
        %571 = vmatprep.subr.mxu0 0.0
        %572 = vmatpush1.msra.mxu0 0.0
        %573 = vmatprep.subr.mxu0 0.0
        %574 = vmatpush1.msra.mxu0 0.0
        %575 = vmatprep.subr.mxu0 0.0
        %576 = vmatpush1.msra.mxu0 0.0
        %577 = vmatprep.subr.mxu0 0.0
        %578 = vmatpush1.msra.mxu0 0.0
        %579 = vmatprep.subr.mxu0 0.0
        %580 = vmatpush1.msra.mxu0 0.0
        %581 = vmatprep.subr.mxu0 0.0
        %582 = vmatpush1.msra.mxu0 0.0
        %583 = vmatprep.subr.mxu0 0.0
        %584 = vmatpush1.msra.mxu0 0.0
        %585 = vmatprep.subr.mxu0 0.0
        %586 = vmatpush1.msra.mxu0 0.0
        %587 = vmatprep.subr.mxu0 0.0
        %588 = vmatpush1.msra.mxu0 0.0
        %589 = vmatprep.subr.mxu0 0.0
        %590 = vmatpush1.msra.mxu0 0.0
        %591 = vmatprep.subr.mxu0 0.0
        %592 = vmatpush1.msra.mxu0 0.0
        %593 = vmatprep.subr.mxu0 0.0
        %594 = vmatpush1.msra.mxu0 0.0
        %595 = vmatprep.subr.mxu0 0.0
        %596 = vmatpush1.msra.mxu0 0.0
        %597 = vmatprep.mubr.f32.mxu0 0.0
        %598 = vmatmul.mubr.f32.gmra.mrb[0].mxu0 %v409
        %v599 = vpop.f32.mrb[0].mxu0
        %v600 = vadd.f32 %v530, %v599
        %v601 = vpop.f32.mrb[0].mxu0
        %602 = vdwg.mxu0
        %v603 = vmul.f32 %v600, 0.5
        %v604 = vmul.f32 %v600, 0.70710677
        %v605 = verf.f32.pop %v604
        %v606 = vadd.f32 %v605, 1.0
        %v607 = vmul.f32 %v603, %v606
        %v608 = vadd.f32 %v607, %v376
        %609 = vadd.xlane.f32.xlu0 %v608
        %v610 = vpop.xlane.xlu0 %609
        %v611 = vmul.f32 %v610, 0.03125
        %v612 = vmul.f32 %v608, %v608
        %613 = vadd.xlane.f32.xlu0 %v612
        %v614 = vpop.xlane.xlu0 %613
        %v615 = vmul.f32 %v614, 0.03125
        %v616 = vmul.f32 %v611, %v611
        %v617 = vsub.f32 %v615, %v616
        %v618 = vsub.f32 %v608, %v611
        %v619 = vadd.f32 %v617, 1e-05
        %v620 = vrsqrt.pop %v619
        %v621 = vmul.f32 %v618, %v620
        %v622 = vld [vmem:[%s4 + $0x1] sm:$0x1]
        %v623 = vlaneseq
        %v624 = vshrl.u32 %v623, 7
        %v625 = vsub.s32 0, %v624
        %v626 = vrot.slane %v622, %v625
        %v627 = vmul.f32 %v621, %v626
        %v628 = vld [vmem:[%s4 + $0x2] sm:$0x1]
        %v629 = vlaneseq
        %v630 = vshrl.u32 %v629, 7
        %v631 = vsub.s32 0, %v630
        %v632 = vrot.slane %v628, %v631
        %v633 = vadd.f32 %v627, %v632
        %634 = vst [vmem:[%s369] sm:$0xff] %v633
        %s635 = sand.u32 %s186, 1
        %s636 = scalar_lea.sflag [#allocation5], %s635
        %s637 = sand.u32 %s186, 1
        %s638 = smul.addr %s637, 8
        %s639 = scalar_lea.vmem [#allocation11], %s638
        // Predicated region
        $region57: #{tpu_custom_call.1} parent=39 // pred_check
          %p640 = pneg %p196
        $region58: #{tpu_custom_call.1} parent=39 // pred_check_branch
          %642 = sbr.rel (%p640) target = $region60
        $region59: #{tpu_custom_call.1} parent=39 // pred_region
          %s644 = ssub.s32 128, 128
          %645 = vsyncadd %s636, %s644
          %s646 = smul.addr %s30, 4
          %s647 = sadd.s32 %s31, %s646
          %s648 = smul.addr %s647, 128
          %s649 = scalar_lea.hbm %s5, %s648
          %s651 = sshll.u32 %s639, 4
          %s652 = int_to_ptr.vmem [resolvable:$true] %s651
          %654 = dma.vmem_to_hbm [thread:$0]  %s652, 128, %s649, %s636
        $region60: #{tpu_custom_call.1} parent=39 // pred_fallthru
          _
      $region40: #{tpu_custom_call.1} parent=5 // pred_fallthru
        _
      %p655 = scmp.le.s32.totalorder 2, %s21
      // Predicated region
      $region61: #{tpu_custom_call.1} parent=5 // pred_check
        %p656 = pneg %p655
      $region62: #{tpu_custom_call.1} parent=5 // pred_check_branch
        %658 = sbr.rel (%p656) target = $region64
      $region63: #{tpu_custom_call.1} parent=5 // pred_region
        %s659 = ssub.s32 %s21, 2
        // Predicated region
        $region65: #{tpu_custom_call.1} parent=63 // pred_check
          %p660 = pneg %p202
        $region66: #{tpu_custom_call.1} parent=63 // pred_check_branch
          %662 = sbr.rel (%p660) target = $region68
        $region67: #{tpu_custom_call.1} parent=63 // pred_region
          %s663 = sand.u32 %s187, 1
          %s664 = scalar_lea.sflag [#allocation5], %s663
          %s665 = sand.u32 %s187, 1
          %s666 = smul.addr %s665, 8
          %s667 = scalar_lea.vmem [#allocation11], %s666
          %668 = dma.done %s664, 128
        $region68: #{tpu_custom_call.1} parent=63 // pred_fallthru
          _
      $region64: #{tpu_custom_call.1} parent=5 // pred_fallthru
        _
    $region6: #{tpu_custom_call.1} parent=1 // loop_footer
      %s25 = sadd.s32 1, %s21
    $region7: #{tpu_custom_call.1} parent=1 // loop_footer_branch
      %20 = sbr.rel target = $region3
    $region8: #{tpu_custom_call.1} parent=1 // loop_exit
      _
    %669 = vsyncpa [#allocation4], 1
    %s670 = scalar_lea.sflag [#allocation4], 1
    %671 = vsyncpa %s670, 1
    %672 = vsyncpa [#allocation7], 1
    %s673 = scalar_lea.sflag [#allocation7], 1
    %674 = vsyncpa %s673, 1
    %675 = vsyncpa [#allocation10], 1
    %676 = vsyncpa [#allocation5], 1
    %s677 = scalar_lea.sflag [#allocation5], 1
    %678 = vsyncpa %s677, 1

</llo_original>
